<compile_context>
chip_gen: v7x
topology: tpu7x:2x2x1
jax: 0.10.0
libtpu: 0.0.40
codegen_flags: <defaults>
</compile_context>

<pallas_src>
import functools
import math

import jax
import jax.numpy as jnp
import numpy as np
from jax import lax
from jax.experimental import pallas as pl
from jax.experimental.pallas import tpu as pltpu

_CLAMP_MIN = 1e-6
_CLAMP_MAX = 1e6
_LANES = 128
_TARGET_BLOCK_BYTES = 2 << 20          # ~2 MiB of input per grid step
_MAX_BLOCK_ROWS = 8192
_STRIP = 512                           # in-kernel row strip (bounds VMEM temporaries)
_VMEM_LIMIT = 32 * 1024 * 1024         # headroom above v5e's 16 MiB default, safe on v6e/v7x
_MIN_PALLAS_BYTES = 256 * 1024         # below this a standalone kernel is pure overhead


@functools.lru_cache(maxsize=None)
def _indicator_matrices(seg, seglen):
    """Constant bf16 matrices for per-segment mean broadcast / compact sum."""
    L = seg * seglen
    r = np.arange(L)
    seg_of = r // seglen
    # mean_mat: (L, L), broadcasts each segment's mean over its own lanes.
    # 1/seglen is a power of two -> exactly representable in bf16.
    mean_mat = np.where(seg_of[:, None] == seg_of[None, :], 1.0 / seglen, 0.0)
    # sum_mat: (L, seg), compacts each segment's sum into output lane j.
    sum_mat = np.where(seg_of[:, None] == np.arange(seg)[None, :], 1.0, 0.0)
    return (jnp.asarray(mean_mat, dtype=jnp.bfloat16),
            jnp.asarray(sum_mat, dtype=jnp.bfloat16))


def _logvar_folded_kernel(x_ref, mmat_ref, smat_ref, o_ref, *, seglen, strip):
    """seg independent variances per block row (lane-dense layout).

    x_ref: (TM, 128) block whose lane axis holds `seg = 128 // seglen` segments
    of `seglen` contiguous samples.  o_ref: (TM, seg).
    Segment reductions run on the MXU (bf16 operands / f32 accumulation); hi/lo
    splits keep ~2^-17 relative accuracy (mean from x_hi+x_lo, sum of squares
    from sq_hi+sq_lo), so no refinement / Chan compensation matmuls are needed.
    The body is strip-mined so temporaries live only per 512-row strip.
    """
    f32, bf16 = jnp.float32, jnp.bfloat16
    mean_mat = mmat_ref[...]        # resident across the grid (constant index_map)
    sum_mat = smat_ref[...]
    need_lo = jnp.dtype(x_ref.dtype).itemsize > 2   # bf16 input: x_hi split is exact

    rows = x_ref.shape[0]
    if rows > strip and rows % strip == 0:
        n_strips, srows = rows // strip, strip
    else:
        n_strips, srows = 1, rows

    def one_strip(x_raw):
        x = x_raw.astype(f32)
        x_hi = x.astype(bf16)
        mean = jnp.dot(x_hi, mean_mat, preferred_element_type=f32)
        if need_lo:
            x_lo = (x - x_hi.astype(f32)).astype(bf16)
            mean = mean + jnp.dot(x_lo, mean_mat, preferred_element_type=f32)
        d = x - mean                                  # per-segment mean removed (f32)
        sq = d * d
        sq_hi = sq.astype(bf16)                       # single cast, reused (no round-trip)
        sq_lo = (sq - sq_hi.astype(f32)).astype(bf16)
        ss = (jnp.dot(sq_hi, sum_mat, preferred_element_type=f32)
              + jnp.dot(sq_lo, sum_mat, preferred_element_type=f32))
        var = jnp.clip(ss * (1.0 / (seglen - 1)), _CLAMP_MIN, _CLAMP_MAX)
        return jnp.log(var).astype(o_ref.dtype)

    if n_strips == 1:
        o_ref[...] = one_strip(x_ref[...])
    else:
        def body(i, carry):
            r0 = pl.multiple_of(i * srows, srows)
            o_ref[pl.ds(r0, srows), :] = one_strip(x_ref[pl.ds(r0, srows), :])
            return carry
        lax.fori_loop(0, n_strips, body, 0, unroll=n_strips <= 8)


def _logvar_rows_kernel(x_ref, o_ref, *, strip):
    """One variance per block row, reduced over the last (lane) axis.

    Used when the reduction length does not divide 128.  Pure f32 on VPU/XLU.
    TODO(synk): the output last dim is 1 (lane-sparse masked stores); output
    bytes are tiny so this is a minor cost — revisit only if profiling says so.
    """
    rows = x_ref.shape[0]
    if rows > strip and rows % strip == 0:
        n_strips, srows = rows // strip, strip
    else:
        n_strips, srows = 1, rows

    def one_strip(x_raw):
        x = x_raw.astype(jnp.float32)
        n = x.shape[-1]
        mean = jnp.sum(x, axis=-1, keepdims=True) * (1.0 / n)
        d = x - mean
        var = jnp.sum(d * d, axis=-1, keepdims=True) * (1.0 / (n - 1))
        return jnp.log(jnp.clip(var, _CLAMP_MIN, _CLAMP_MAX)).astype(o_ref.dtype)

    if n_strips == 1:
        o_ref[...] = one_strip(x_ref[...])
    else:
        def body(i, carry):
            r0 = pl.multiple_of(i * srows, srows)
            o_ref[pl.ds(r0, srows), :] = one_strip(x_ref[pl.ds(r0, srows), :])
            return carry
        lax.fori_loop(0, n_strips, body, 0, unroll=n_strips <= 8)


def _logvar_sublane_kernel(x_ref, o_ref):
    """Reduce over the sublane (middle) axis of a (BL, t, TN) block.

    Avoids the XLA transpose for dim != last when the trailing dims are
    lane-dense; reductions across sublanes are cheap VPU adds, output is
    lane-dense (TN multiple of 128).
    """
    x = x_ref[...].astype(jnp.float32)
    n = x.shape[1]
    mean = jnp.sum(x, axis=1, keepdims=True) * (1.0 / n)
    d = x - mean
    var = jnp.sum(d * d, axis=1, keepdims=True) * (1.0 / (n - 1))
    o_ref[...] = jnp.log(jnp.clip(var, _CLAMP_MIN, _CLAMP_MAX)).astype(o_ref.dtype)


def _log_var_rows_pallas(x2d, block_rows=None):
    """log-variance of every row of a (rows, t) array -> (rows, 1)."""
    rows, t = x2d.shape
    dt = x2d.dtype
    sub = max(8, 32 // dt.itemsize)          # sublane packing: 8 f32 / 16 bf16 / 32 int8

    fold = _LANES // t if (t <= _LANES and _LANES % t == 0) else 1

    pad = 0
    if fold > 1 and rows % fold:
        # Tiny one-time pad (< fold rows) so the lane-dense folded path is
        # always taken; padded rows are sliced off the (small) output below.
        pad = fold - rows % fold
        x2d = jnp.pad(x2d, ((0, pad), (0, 0)))
    rows_p = rows + pad
    r2 = rows_p // fold
    lane = fold * t

    if block_rows is None:
        block_rows = _TARGET_BLOCK_BYTES // max(lane * dt.itemsize, 1)
    block_rows = max(sub, int(block_rows))
    block_rows -= block_rows % sub
    block_rows = min(block_rows, _MAX_BLOCK_ROWS)
    if block_rows >= r2:
        block_rows = r2                       # single block covering the full extent
    elif block_rows > _STRIP:
        block_rows -= block_rows % _STRIP     # keep the in-kernel strip loop exact

    grid = (pl.cdiv(r2, block_rows),)
    x_f = x2d.reshape(r2, lane)               # free reshape (contiguous reinterpretation)

    # TODO(synk): on v7x, verify the row axis actually shards across both
    # TensorCores; if not, switch to pltpu.CORE_PARALLEL / pl.core_map.
    cparams = pltpu.CompilerParams(dimension_semantics=("parallel",),
                                   vmem_limit_bytes=_VMEM_LIMIT)

    if fold > 1:
        mean_mat, sum_mat = _indicator_matrices(fold, t)
        out = pl.pallas_call(
            functools.partial(_logvar_folded_kernel, seglen=t, strip=_STRIP),
            out_shape=jax.ShapeDtypeStruct((r2, fold), dt),
            grid=grid,
            in_specs=[
                pl.BlockSpec((block_rows, lane), lambda i: (i, 0)),
                pl.BlockSpec((lane, lane), lambda i: (0, 0)),   # constant -> VMEM-resident
                pl.BlockSpec((lane, fold), lambda i: (0, 0)),   # constant -> VMEM-resident
            ],
            out_specs=pl.BlockSpec((block_rows, fold), lambda i: (i, 0)),
            compiler_params=cparams,
        )(x_f, mean_mat, sum_mat)
    else:
        # TODO(synk): for reduction lengths too large to fit one VMEM block, add
        # a second "arbitrary" grid axis with an f32 (sum, sumsq) accumulator.
        out = pl.pallas_call(
            functools.partial(_logvar_rows_kernel, strip=_STRIP),
            out_shape=jax.ShapeDtypeStruct((r2, 1), dt),
            grid=grid,
            in_specs=[pl.BlockSpec((block_rows, lane), lambda i: (i, 0))],
            out_specs=pl.BlockSpec((block_rows, 1), lambda i: (i, 0)),
            compiler_params=cparams,
        )(x_f)

    out = out.reshape(rows_p, 1)
    return out[:rows] if pad else out


def _log_var_sublane_pallas(x3):
    """log-variance over axis=1 of (lead, t, trail) with trail % 128 == 0."""
    lead, t, trail = x3.shape
    dt = x3.dtype
    row_bytes = t * trail * dt.itemsize
    if row_bytes <= _TARGET_BLOCK_BYTES:
        tn = trail
        bl = min(lead, max(1, _TARGET_BLOCK_BYTES // row_bytes))
    else:
        tn = max(_LANES, (_TARGET_BLOCK_BYTES // (t * dt.itemsize)) // _LANES * _LANES)
        tn = min(tn, trail)
        bl = 1
    grid = (pl.cdiv(lead, bl), pl.cdiv(trail, tn))
    return pl.pallas_call(
        _logvar_sublane_kernel,
        out_shape=jax.ShapeDtypeStruct((lead, 1, trail), dt),
        grid=grid,
        in_specs=[pl.BlockSpec((bl, t, tn), lambda i, j: (i, 0, j))],
        out_specs=pl.BlockSpec((bl, 1, tn), lambda i, j: (i, 0, j)),
        compiler_params=pltpu.CompilerParams(
            dimension_semantics=("parallel", "parallel"),
            vmem_limit_bytes=_VMEM_LIMIT),
    )(x3)


def log_var_layer(x, dim, *, use_pallas=None, block_rows=None):
    """log(clamp(var(x, dim, unbiased, keepdim=True), 1e-6, 1e6))."""
    ndim = x.ndim
    axis = dim % ndim
    t = x.shape[axis]
    if t < 2:
        raise ValueError("unbiased variance needs at least 2 elements along `dim`")

    if use_pallas is None:
        use_pallas = x.size * x.dtype.itemsize >= _MIN_PALLAS_BYTES
    if not use_pallas:
        # Tiny inputs: let XLA fuse the reduction (standalone kernel is overhead).
        var = jnp.var(x.astype(jnp.float32), axis=axis, ddof=1, keepdims=True)
        return jnp.log(jnp.clip(var, _CLAMP_MIN, _CLAMP_MAX)).astype(x.dtype)

    if axis == ndim - 1:
        lead = x.shape[:-1]
        rows = math.prod(lead) if lead else 1
        out = _log_var_rows_pallas(x.reshape(rows, t), block_rows=block_rows)
        return out.reshape(lead + (1,))

    trail = math.prod(x.shape[axis + 1:])
    lead = math.prod(x.shape[:axis])
    if trail % _LANES == 0:
        # Keep the original layout and reduce over the sublane axis: no XLA
        # transpose, no extra HBM pass, lane-dense output.
        out3 = _log_var_sublane_pallas(x.reshape(lead, t, trail))
        return out3.reshape(x.shape[:axis] + (1,) + x.shape[axis + 1:])

    # Fallback for non-lane-dense trailing dims: one XLA transpose, then rows path.
    xm = jnp.moveaxis(x, axis, -1)
    lead_shape = xm.shape[:-1]
    rows = math.prod(lead_shape) if lead_shape else 1
    out = _log_var_rows_pallas(xm.reshape(rows, t), block_rows=block_rows)
    out = out.reshape(lead_shape + (1,))
    return jnp.moveaxis(out, -1, axis)


if __name__ == "__main__":
    key = jax.random.PRNGKey(0)
    ks = jax.random.split(key, 7)

    def reference(x, dim):
        var = jnp.var(x.astype(jnp.float32), axis=dim, ddof=1, keepdims=True)
        return jnp.log(jnp.clip(var, _CLAMP_MIN, _CLAMP_MAX)).astype(x.dtype)

    checks = []

    # Bio_FSTNet usage: [B, C, S, T] = [2, 4, 8, 32], reduce over time (dim=3).
    x1 = jax.random.normal(ks[0], (2, 4, 8, 32), dtype=jnp.float32)
    out_auto = log_var_layer(x1, dim=3)                     # tiny -> fused XLA path
    out_pal = log_var_layer(x1, dim=3, use_pallas=True)     # folded MXU path (fold=4)
    assert out_auto.shape == (2, 4, 8, 1) and out_pal.shape == (2, 4, 8, 1)
    checks += [(out_auto, reference(x1, 3), 2e-4), (out_pal, reference(x1, 3), 2e-4)]

    # DC-offset robustness through the folded path (hi/lo-split mean).
    x1_off = x1 + 100.0
    checks.append((log_var_layer(x1_off, dim=3, use_pallas=True),
                   reference(x1_off, 3), 2e-4))

    # Multi-step grid with a ragged trailing block (folded path, fold=4).
    x2 = jax.random.normal(ks[1], (4, 9, 30, 32), dtype=jnp.float32)   # 1080 rows
    checks.append((log_var_layer(x2, dim=3, use_pallas=True, block_rows=64),
                   reference(x2, 3), 2e-4))

    # Unfolded path (t=160 does not divide 128), multi-step grid.
    x3 = jax.random.normal(ks[2], (2, 3, 8, 160), dtype=jnp.float32)
    checks.append((log_var_layer(x3, dim=3, use_pallas=True, block_rows=16),
                   reference(x3, 3), 2e-4))

    # dim != last with non-lane-dense trailing dims -> moveaxis fallback (fold=16).
    out_d2 = log_var_layer(x1, dim=2, use_pallas=True)
    assert out_d2.shape == (2, 4, 1, 32)
    checks.append((out_d2, reference(x1, 2), 2e-4))

    # dim != last with lane-dense trailing dims -> sublane kernel, no transpose.
    x4 = jax.random.normal(ks[3], (2, 4, 16, 128), dtype=jnp.float32) + 5.0
    out_sub = log_var_layer(x4, dim=2, use_pallas=True)
    assert out_sub.shape == (2, 4, 1, 128)
    checks.append((out_sub, reference(x4, 2), 2e-4))

    # Row count not divisible by the fold factor -> tiny pad keeps the folded path.
    x5 = jax.random.normal(ks[4], (3, 19, 32), dtype=jnp.float32)       # 57 rows, fold=4
    checks.append((log_var_layer(x5, dim=2, use_pallas=True), reference(x5, 2), 2e-4))

    # bf16 input: folded path drops the x_lo matmul and uses 16-row alignment.
    x6 = jax.random.normal(ks[5], (2, 4, 8, 64), dtype=jnp.bfloat16)
    checks.append((log_var_layer(x6, dim=3, use_pallas=True), reference(x6, 3), 2e-2))

    # Large-enough block to exercise the in-kernel strip-mining loop (2 strips).
    x7 = jax.random.normal(ks[6], (8, 16, 32, 32), dtype=jnp.float32)   # 4096 rows
    checks.append((log_var_layer(x7, dim=3), reference(x7, 3), 2e-4))

    for got, want, tol in checks:
        got = jax.block_until_ready(got)
        assert got.shape == want.shape, (got.shape, want.shape)
        g = got.astype(jnp.float32)
        w = want.astype(jnp.float32)
        err = float(jnp.max(jnp.abs(g - w)))
        assert jnp.allclose(g, w, atol=tol, rtol=tol), err

    print("KERNEL_OK")
</pallas_src>

<mosaic_0001>
module attributes {stable_mosaic.version = 11 : i64} {
  func.func @_logvar_folded_kernel(%arg0: i32, %arg1: memref<16x128xf32, #tpu.memory_space<vmem>>, %arg2: memref<128x128xbf16, #tpu.memory_space<vmem>>, %arg3: memref<128x4xbf16, #tpu.memory_space<vmem>>, %arg4: memref<16x4xf32, #tpu.memory_space<vmem>>) attributes {dimension_semantics = [#tpu.dimension_semantics<parallel>], iteration_bounds = array<i64: 1>, scalar_prefetch = 0 : i64, scratch_operands = 0 : i64, tpu.core_type = #tpu.core_type<tc>, window_params = [{transform_indices = @transform_0, window_bounds = array<i64: 16, 128>}, {pipeline_mode = #tpu.pipeline_mode<synchronous>, transform_indices = @transform_1, window_bounds = array<i64: 128, 128>}, {pipeline_mode = #tpu.pipeline_mode<synchronous>, transform_indices = @transform_2, window_bounds = array<i64: 128, 4>}, {transform_indices = @transform_3, window_bounds = array<i64: 16, 4>}]} {
    %c0 = arith.constant 0 : index
    %c0_0 = arith.constant 0 : index
    %0 = vector.load %arg2[%c0, %c0_0] : memref<128x128xbf16, #tpu.memory_space<vmem>>, vector<128x128xbf16>
    %c0_1 = arith.constant 0 : index
    %c0_2 = arith.constant 0 : index
    %1 = vector.load %arg3[%c0_1, %c0_2] : memref<128x4xbf16, #tpu.memory_space<vmem>>, vector<128x4xbf16>
    %c0_3 = arith.constant 0 : index
    %c0_4 = arith.constant 0 : index
    %2 = vector.load %arg1[%c0_3, %c0_4] : memref<16x128xf32, #tpu.memory_space<vmem>>, vector<16x128xf32>
    %3 = arith.truncf %2 : vector<16x128xf32> to vector<16x128xbf16>
    %cst = arith.constant dense<0.000000e+00> : vector<16x128xf32>
    %4 = tpu.matmul %3, %0, %cst {dimension_numbers = #tpu.dot_dimension_numbers<[1], [0], [0], [1], [0, 0, 1, 1], [], []>} : vector<16x128xbf16>, vector<128x128xbf16>, vector<16x128xf32> -> vector<16x128xf32>
    %5 = arith.extf %3 : vector<16x128xbf16> to vector<16x128xf32>
    %6 = arith.subf %2, %5 : vector<16x128xf32>
    %7 = arith.truncf %6 : vector<16x128xf32> to vector<16x128xbf16>
    %cst_5 = arith.constant dense<0.000000e+00> : vector<16x128xf32>
    %8 = tpu.matmul %7, %0, %cst_5 {dimension_numbers = #tpu.dot_dimension_numbers<[1], [0], [0], [1], [0, 0, 1, 1], [], []>} : vector<16x128xbf16>, vector<128x128xbf16>, vector<16x128xf32> -> vector<16x128xf32>
    %9 = arith.addf %4, %8 : vector<16x128xf32>
    %10 = arith.subf %2, %9 : vector<16x128xf32>
    %11 = arith.mulf %10, %10 : vector<16x128xf32>
    %12 = arith.truncf %11 : vector<16x128xf32> to vector<16x128xbf16>
    %13 = arith.extf %12 : vector<16x128xbf16> to vector<16x128xf32>
    %14 = arith.subf %11, %13 : vector<16x128xf32>
    %15 = arith.truncf %14 : vector<16x128xf32> to vector<16x128xbf16>
    %cst_6 = arith.constant dense<0.000000e+00> : vector<16x4xf32>
    %16 = tpu.matmul %12, %1, %cst_6 {dimension_numbers = #tpu.dot_dimension_numbers<[1], [0], [0], [1], [0, 0, 1, 1], [], []>} : vector<16x128xbf16>, vector<128x4xbf16>, vector<16x4xf32> -> vector<16x4xf32>
    %cst_7 = arith.constant dense<0.000000e+00> : vector<16x4xf32>
    %17 = tpu.matmul %15, %1, %cst_7 {dimension_numbers = #tpu.dot_dimension_numbers<[1], [0], [0], [1], [0, 0, 1, 1], [], []>} : vector<16x128xbf16>, vector<128x4xbf16>, vector<16x4xf32> -> vector<16x4xf32>
    %18 = arith.addf %16, %17 : vector<16x4xf32>
    %cst_8 = arith.constant 0.0322580636 : f32
    %19 = vector.broadcast %cst_8 : f32 to vector<16x4xf32>
    %20 = arith.mulf %18, %19 : vector<16x4xf32>
    %cst_9 = arith.constant 9.99999997E-7 : f32
    %cst_10 = arith.constant 1.000000e+06 : f32
    %21 = vector.broadcast %cst_9 : f32 to vector<16x4xf32>
    %22 = arith.maximumf %21, %20 : vector<16x4xf32>
    %23 = vector.broadcast %cst_10 : f32 to vector<16x4xf32>
    %24 = arith.minimumf %23, %22 : vector<16x4xf32>
    %25 = math.log %24 : vector<16x4xf32>
    %c0_11 = arith.constant 0 : index
    %c0_12 = arith.constant 0 : index
    %26 = vector.load %arg4[%c0_11, %c0_12] : memref<16x4xf32, #tpu.memory_space<vmem>>, vector<16x4xf32>
    tpu.vector_store %arg4[%c0_11, %c0_12], %25 {strides = array<i32>} : memref<16x4xf32, #tpu.memory_space<vmem>>, vector<16x4xf32>,
    return
  }
  func.func @transform_0(%arg0: i32) -> (i32, i32) {
    %c0_i32 = arith.constant 0 : i32
    %c0_i32_0 = arith.constant 0 : i32
    return %arg0, %c0_i32 : i32, i32
  }
  func.func @transform_1(%arg0: i32) -> (i32, i32) {
    %c0_i32 = arith.constant 0 : i32
    %c0_i32_0 = arith.constant 0 : i32
    %c0_i32_1 = arith.constant 0 : i32
    return %c0_i32, %c0_i32_0 : i32, i32
  }
  func.func @transform_2(%arg0: i32) -> (i32, i32) {
    %c0_i32 = arith.constant 0 : i32
    %c0_i32_0 = arith.constant 0 : i32
    %c0_i32_1 = arith.constant 0 : i32
    return %c0_i32, %c0_i32_0 : i32, i32
  }
  func.func @transform_3(%arg0: i32) -> (i32, i32) {
    %c0_i32 = arith.constant 0 : i32
    %c0_i32_0 = arith.constant 0 : i32
    return %arg0, %c0_i32 : i32, i32
  }
}

</mosaic_0001>

<llo_original>
// kernel: tpu_custom_call.1
$region0: #{tpu_custom_call.1}
  #allocation0 [shape = 'u32[]', space=smem, size = 0x4, offset = 0x4, fixed_abs, tag = 'smem constant byte address 0x4 - core index']
  #allocation1 [shape = 'u32[144,128]{1,0:T(1,128)}', space=vmem, size = 0x12000, scoped, tag = 'internal scratch']
  %s0 = inlined_call_operand.hbm [shape: f32[16,128], index: 0, kind: input, shape index: {}]
  %s1 = inlined_call_operand.vmem [shape: bf16[128,128], index: 1, kind: input, shape index: {}]
  %s2 = inlined_call_operand.vmem [shape: bf16[128,4], index: 2, kind: input, shape index: {}]
  %s3 = inlined_call_operand.vmem [shape: f32[16,4], index: 3, kind: output, shape index: {}]
  %s4 = sld [smem:[#allocation0]]
  $region26: #{tpu_custom_call.1} parent=0
    _
  %s6 = ssub.s32 1, %s4
  %s7 = scalar_select 0, %s6, %s4
  $region1: #{tpu_custom_call.1} parent=0
    #allocation2 [shape = 'u8[8192]{0}', space=vmem, size = 0x2000, scoped, tag = 'input window, operand 0, single buffered']
    #allocation3 [shape = 's32[1]{0}', space=sflag, size = 0x4, scoped, tag = 'scoped memory for tpu_custom_call.1']
    %8 = vsyncpa [#allocation3], 0
    // Predicated region
    $region2: #{tpu_custom_call.1} parent=1 // pred_check
      _
    $region3: #{tpu_custom_call.1} parent=1 // pred_check_branch
      %10 = sbr.rel (0) target = $region5
    $region4: #{tpu_custom_call.1} parent=1 // pred_region
      %s12 = ssub.s32 256, 256
      %13 = vsyncadd [#allocation3], %s12
      %s14 = sshll.u32 [#allocation2], 4
      %s15 = int_to_ptr.vmem [resolvable:$true] %s14
      %20 = dma.hbm_to_vmem [thread:$0]  %s0, 256, %s15, [#allocation3], 128, 128, 8
    $region5: #{tpu_custom_call.1} parent=1 // pred_fallthru
      _
    // Predicated region
    $region6: #{tpu_custom_call.1} parent=1 // pred_check
      _
    $region7: #{tpu_custom_call.1} parent=1 // pred_check_branch
      %22 = sbr.rel (0) target = $region9
    $region8: #{tpu_custom_call.1} parent=1 // pred_region
      _
    $region9: #{tpu_custom_call.1} parent=1 // pred_fallthru
      _
    // Predicated region
    $region10: #{tpu_custom_call.1} parent=1 // pred_check
      _
    $region11: #{tpu_custom_call.1} parent=1 // pred_check_branch
      %24 = sbr.rel (0) target = $region13
    $region12: #{tpu_custom_call.1} parent=1 // pred_region
      _
    $region13: #{tpu_custom_call.1} parent=1 // pred_fallthru
      _
    // Predicated region
    $region14: #{tpu_custom_call.1} parent=1 // pred_check
      _
    $region15: #{tpu_custom_call.1} parent=1 // pred_check_branch
      %26 = sbr.rel (0) target = $region17
    $region16: #{tpu_custom_call.1} parent=1 // pred_region
      %27 = dma.done [#allocation3], 256
    $region17: #{tpu_custom_call.1} parent=1 // pred_fallthru
      _
    %v29 = vld [vmem:[%s1] sm:$0xf]
    %v30 = vld [vmem:[%s1 + $0x4] sm:$0xf]
    %v31 = vld [vmem:[%s1 + $0x8] sm:$0xf]
    %v32 = vld [vmem:[%s1 + $0xc] sm:$0xf]
    %v33 = vld [vmem:[%s1 + $0x10] sm:$0xf]
    %v34 = vld [vmem:[%s1 + $0x14] sm:$0xf]
    %v35 = vld [vmem:[%s1 + $0x18] sm:$0xf]
    %v36 = vld [vmem:[%s1 + $0x1c] sm:$0xf]
    %v37 = vld [vmem:[%s1 + $0x20] sm:$0xf]
    %v38 = vld [vmem:[%s1 + $0x24] sm:$0xf]
    %v39 = vld [vmem:[%s1 + $0x28] sm:$0xf]
    %v40 = vld [vmem:[%s1 + $0x2c] sm:$0xf]
    %v41 = vld [vmem:[%s1 + $0x30] sm:$0xf]
    %v42 = vld [vmem:[%s1 + $0x34] sm:$0xf]
    %v43 = vld [vmem:[%s1 + $0x38] sm:$0xf]
    %v44 = vld [vmem:[%s1 + $0x3c] sm:$0xf]
    %v45 = vld [vmem:[%s2] sm:$0xf]
    %v46 = vld [vmem:[%s2 + $0x4] sm:$0xf]
    %v47 = vld [vmem:[%s2 + $0x8] sm:$0xf]
    %v48 = vld [vmem:[%s2 + $0xc] sm:$0xf]
    %v49 = vld [vmem:[%s2 + $0x10] sm:$0xf]
    %v50 = vld [vmem:[%s2 + $0x14] sm:$0xf]
    %v51 = vld [vmem:[%s2 + $0x18] sm:$0xf]
    %v52 = vld [vmem:[%s2 + $0x1c] sm:$0xf]
    %v53 = vld [vmem:[%s2 + $0x20] sm:$0xf]
    %v54 = vld [vmem:[%s2 + $0x24] sm:$0xf]
    %v55 = vld [vmem:[%s2 + $0x28] sm:$0xf]
    %v56 = vld [vmem:[%s2 + $0x2c] sm:$0xf]
    %v57 = vld [vmem:[%s2 + $0x30] sm:$0xf]
    %v58 = vld [vmem:[%s2 + $0x34] sm:$0xf]
    %v59 = vld [vmem:[%s2 + $0x38] sm:$0xf]
    %v60 = vld [vmem:[%s2 + $0x3c] sm:$0xf]
    %v61 = vld [vmem:[#allocation2] sm:$0xff]
    %v62 = vld [vmem:[#allocation2 + $0x8] sm:$0xff]
    %v63 = vpack.c.bf16 %v62, %v61
    %v64 = vunpack.c.l.bf16 %v63
    %v65 = vunpack.c.h.bf16 %v63
    %v66 = vsub.f32 %v61, %v64
    %v67 = vsub.f32 %v62, %v65
    %v68 = vpack.c.bf16 %v67, %v66
    %v85 = vunpack.c.l.b16 %v29
    %v86 = vunpack.c.l.b16 %v30
    %v87 = vunpack.c.l.b16 %v31
    %v88 = vunpack.c.l.b16 %v32
    %v89 = vunpack.c.l.b16 %v33
    %v90 = vunpack.c.l.b16 %v34
    %v91 = vunpack.c.l.b16 %v35
    %v92 = vunpack.c.l.b16 %v36
    %v93 = vunpack.c.l.b16 %v37
    %v94 = vunpack.c.l.b16 %v38
    %v95 = vunpack.c.l.b16 %v39
    %v96 = vunpack.c.l.b16 %v40
    %v97 = vunpack.c.l.b16 %v41
    %v98 = vunpack.c.l.b16 %v42
    %v99 = vunpack.c.l.b16 %v43
    %v100 = vunpack.c.l.b16 %v44
    %v101 = vpack.c.b16 %v86, %v85
    %v102 = vpack.c.b16 %v88, %v87
    %v103 = vpack.c.b16 %v90, %v89
    %v104 = vpack.c.b16 %v92, %v91
    %v105 = vpack.c.b16 %v94, %v93
    %v106 = vpack.c.b16 %v96, %v95
    %v107 = vpack.c.b16 %v98, %v97
    %v108 = vpack.c.b16 %v100, %v99
    %117 = vmatprep.subr.bf16.mxu0 0
    %118 = vmatpush1.bf16.msra.mxu0 %v101
    %119 = vmatprep.subr.bf16.mxu0 0
    %120 = vmatpush1.bf16.msra.mxu0 %v102
    %121 = vmatprep.subr.bf16.mxu0 0
    %122 = vmatpush1.bf16.msra.mxu0 %v103
    %123 = vmatprep.subr.bf16.mxu0 0
    %124 = vmatpush1.bf16.msra.mxu0 %v104
    %125 = vmatprep.subr.bf16.mxu0 0
    %126 = vmatpush1.bf16.msra.mxu0 %v105
    %127 = vmatprep.subr.bf16.mxu0 0
    %128 = vmatpush1.bf16.msra.mxu0 %v106
    %129 = vmatprep.subr.bf16.mxu0 0
    %130 = vmatpush1.bf16.msra.mxu0 %v107
    %131 = vmatprep.subr.bf16.mxu0 0
    %132 = vmatpush1.bf16.msra.mxu0 %v108
    %133 = vmatprep.subr.bf16.mxu0 0
    %134 = vmatpush1.bf16.msra.mxu0 0
    %135 = vmatprep.subr.bf16.mxu0 0
    %136 = vmatpush1.bf16.msra.mxu0 0
    %137 = vmatprep.subr.bf16.mxu0 0
    %138 = vmatpush1.bf16.msra.mxu0 0
    %139 = vmatprep.subr.bf16.mxu0 0
    %140 = vmatpush1.bf16.msra.mxu0 0
    %141 = vmatprep.subr.bf16.mxu0 0
    %142 = vmatpush1.bf16.msra.mxu0 0
    %143 = vmatprep.subr.bf16.mxu0 0
    %144 = vmatpush1.bf16.msra.mxu0 0
    %145 = vmatprep.subr.bf16.mxu0 0
    %146 = vmatpush1.bf16.msra.mxu0 0
    %147 = vmatprep.subr.bf16.mxu0 0
    %148 = vmatpush1.bf16.msra.mxu0 0
    %149 = vmatprep.mubr.bf16.mxu0 0
    %150 = vmatmul.mubr.bf16.gmra.mrb[0].mxu0 %v68
    %v151 = vpop.f32.mrb[0].mxu0
    %v152 = vadd.f32 0.0, %v151
    %v153 = vpop.f32.mrb[0].mxu0
    %v154 = vpop.f32.mrb[0].mxu0
    %v155 = vadd.f32 0.0, %v154
    %v156 = vpop.f32.mrb[0].mxu0
    %157 = vdwg.mxu0
    %158 = vmatprep.subr.bf16.mxu0 0
    %159 = vmatpush1.bf16.msra.mxu0 %v101
    %160 = vmatprep.subr.bf16.mxu0 0
    %161 = vmatpush1.bf16.msra.mxu0 %v102
    %162 = vmatprep.subr.bf16.mxu0 0
    %163 = vmatpush1.bf16.msra.mxu0 %v103
    %164 = vmatprep.subr.bf16.mxu0 0
    %165 = vmatpush1.bf16.msra.mxu0 %v104
    %166 = vmatprep.subr.bf16.mxu0 0
    %167 = vmatpush1.bf16.msra.mxu0 %v105
    %168 = vmatprep.subr.bf16.mxu0 0
    %169 = vmatpush1.bf16.msra.mxu0 %v106
    %170 = vmatprep.subr.bf16.mxu0 0
    %171 = vmatpush1.bf16.msra.mxu0 %v107
    %172 = vmatprep.subr.bf16.mxu0 0
    %173 = vmatpush1.bf16.msra.mxu0 %v108
    %174 = vmatprep.subr.bf16.mxu0 0
    %175 = vmatpush1.bf16.msra.mxu0 0
    %176 = vmatprep.subr.bf16.mxu0 0
    %177 = vmatpush1.bf16.msra.mxu0 0
    %178 = vmatprep.subr.bf16.mxu0 0
    %179 = vmatpush1.bf16.msra.mxu0 0
    %180 = vmatprep.subr.bf16.mxu0 0
    %181 = vmatpush1.bf16.msra.mxu0 0
    %182 = vmatprep.subr.bf16.mxu0 0
    %183 = vmatpush1.bf16.msra.mxu0 0
    %184 = vmatprep.subr.bf16.mxu0 0
    %185 = vmatpush1.bf16.msra.mxu0 0
    %186 = vmatprep.subr.bf16.mxu0 0
    %187 = vmatpush1.bf16.msra.mxu0 0
    %188 = vmatprep.subr.bf16.mxu0 0
    %189 = vmatpush1.bf16.msra.mxu0 0
    %190 = vmatprep.mubr.bf16.mxu0 0
    %191 = vmatmul.mubr.bf16.gmra.mrb[0].mxu0 %v63
    %v192 = vpop.f32.mrb[0].mxu0
    %v193 = vadd.f32 %v152, %v192
    %v194 = vpop.f32.mrb[0].mxu0
    %v195 = vpop.f32.mrb[0].mxu0
    %v196 = vadd.f32 %v155, %v195
    %v197 = vpop.f32.mrb[0].mxu0
    %198 = vdwg.mxu0
    %v199 = vsub.f32 %v61, %v193
    %v200 = vsub.f32 %v62, %v196
    %v201 = vmul.f32 %v199, %v199
    %v202 = vmul.f32 %v200, %v200
    %v203 = vpack.c.bf16 %v202, %v201
    %v204 = vunpack.c.l.bf16 %v203
    %v205 = vunpack.c.h.bf16 %v203
    %v206 = vsub.f32 %v201, %v204
    %v207 = vsub.f32 %v202, %v205
    %v208 = vpack.c.bf16 %v207, %v206
    %v225 = vunpack.c.l.b16 %v45
    %v226 = vunpack.c.l.b16 %v46
    %v227 = vunpack.c.l.b16 %v47
    %v228 = vunpack.c.l.b16 %v48
    %v229 = vunpack.c.l.b16 %v49
    %v230 = vunpack.c.l.b16 %v50
    %v231 = vunpack.c.l.b16 %v51
    %v232 = vunpack.c.l.b16 %v52
    %v233 = vunpack.c.l.b16 %v53
    %v234 = vunpack.c.l.b16 %v54
    %v235 = vunpack.c.l.b16 %v55
    %v236 = vunpack.c.l.b16 %v56
    %v237 = vunpack.c.l.b16 %v57
    %v238 = vunpack.c.l.b16 %v58
    %v239 = vunpack.c.l.b16 %v59
    %v240 = vunpack.c.l.b16 %v60
    %v241 = vpack.c.b16 %v226, %v225
    %v242 = vpack.c.b16 %v228, %v227
    %v243 = vpack.c.b16 %v230, %v229
    %v244 = vpack.c.b16 %v232, %v231
    %v245 = vpack.c.b16 %v234, %v233
    %v246 = vpack.c.b16 %v236, %v235
    %v247 = vpack.c.b16 %v238, %v237
    %v248 = vpack.c.b16 %v240, %v239
    %257 = vmatprep.subr.bf16.mxu0 0
    %258 = vmatpush1.bf16.msra.mxu0 %v241
    %259 = vmatprep.subr.bf16.mxu0 0
    %260 = vmatpush1.bf16.msra.mxu0 %v242
    %261 = vmatprep.subr.bf16.mxu0 0
    %262 = vmatpush1.bf16.msra.mxu0 %v243
    %263 = vmatprep.subr.bf16.mxu0 0
    %264 = vmatpush1.bf16.msra.mxu0 %v244
    %265 = vmatprep.subr.bf16.mxu0 0
    %266 = vmatpush1.bf16.msra.mxu0 %v245
    %267 = vmatprep.subr.bf16.mxu0 0
    %268 = vmatpush1.bf16.msra.mxu0 %v246
    %269 = vmatprep.subr.bf16.mxu0 0
    %270 = vmatpush1.bf16.msra.mxu0 %v247
    %271 = vmatprep.subr.bf16.mxu0 0
    %272 = vmatpush1.bf16.msra.mxu0 %v248
    %273 = vmatprep.subr.bf16.mxu0 0
    %274 = vmatpush1.bf16.msra.mxu0 0
    %275 = vmatprep.subr.bf16.mxu0 0
    %276 = vmatpush1.bf16.msra.mxu0 0
    %277 = vmatprep.subr.bf16.mxu0 0
    %278 = vmatpush1.bf16.msra.mxu0 0
    %279 = vmatprep.subr.bf16.mxu0 0
    %280 = vmatpush1.bf16.msra.mxu0 0
    %281 = vmatprep.subr.bf16.mxu0 0
    %282 = vmatpush1.bf16.msra.mxu0 0
    %283 = vmatprep.subr.bf16.mxu0 0
    %284 = vmatpush1.bf16.msra.mxu0 0
    %285 = vmatprep.subr.bf16.mxu0 0
    %286 = vmatpush1.bf16.msra.mxu0 0
    %287 = vmatprep.subr.bf16.mxu0 0
    %288 = vmatpush1.bf16.msra.mxu0 0
    %289 = vmatprep.mubr.bf16.mxu0 0
    %290 = vmatmul.mubr.bf16.gmra.mrb[0].mxu0 %v208
    %v291 = vpop.f32.mrb[0].mxu0
    %v292 = vadd.f32 0.0, %v291
    %v293 = vpop.f32.mrb[0].mxu0
    %v294 = vpop.f32.mrb[0].mxu0
    %v295 = vadd.f32 0.0, %v294
    %v296 = vpop.f32.mrb[0].mxu0
    %297 = vdwg.mxu0
    %298 = vmatprep.subr.bf16.mxu0 0
    %299 = vmatpush1.bf16.msra.mxu0 %v241
    %300 = vmatprep.subr.bf16.mxu0 0
    %301 = vmatpush1.bf16.msra.mxu0 %v242
    %302 = vmatprep.subr.bf16.mxu0 0
    %303 = vmatpush1.bf16.msra.mxu0 %v243
    %304 = vmatprep.subr.bf16.mxu0 0
    %305 = vmatpush1.bf16.msra.mxu0 %v244
    %306 = vmatprep.subr.bf16.mxu0 0
    %307 = vmatpush1.bf16.msra.mxu0 %v245
    %308 = vmatprep.subr.bf16.mxu0 0
    %309 = vmatpush1.bf16.msra.mxu0 %v246
    %310 = vmatprep.subr.bf16.mxu0 0
    %311 = vmatpush1.bf16.msra.mxu0 %v247
    %312 = vmatprep.subr.bf16.mxu0 0
    %313 = vmatpush1.bf16.msra.mxu0 %v248
    %314 = vmatprep.subr.bf16.mxu0 0
    %315 = vmatpush1.bf16.msra.mxu0 0
    %316 = vmatprep.subr.bf16.mxu0 0
    %317 = vmatpush1.bf16.msra.mxu0 0
    %318 = vmatprep.subr.bf16.mxu0 0
    %319 = vmatpush1.bf16.msra.mxu0 0
    %320 = vmatprep.subr.bf16.mxu0 0
    %321 = vmatpush1.bf16.msra.mxu0 0
    %322 = vmatprep.subr.bf16.mxu0 0
    %323 = vmatpush1.bf16.msra.mxu0 0
    %324 = vmatprep.subr.bf16.mxu0 0
    %325 = vmatpush1.bf16.msra.mxu0 0
    %326 = vmatprep.subr.bf16.mxu0 0
    %327 = vmatpush1.bf16.msra.mxu0 0
    %328 = vmatprep.subr.bf16.mxu0 0
    %329 = vmatpush1.bf16.msra.mxu0 0
    %330 = vmatprep.mubr.bf16.mxu0 0
    %331 = vmatmul.mubr.bf16.gmra.mrb[0].mxu0 %v203
    %v332 = vpop.f32.mrb[0].mxu0
    %v333 = vadd.f32 %v292, %v332
    %v334 = vpop.f32.mrb[0].mxu0
    %v335 = vpop.f32.mrb[0].mxu0
    %v336 = vadd.f32 %v295, %v335
    %v337 = vpop.f32.mrb[0].mxu0
    %338 = vdwg.mxu0
    %v339 = vmul.f32 %v333, 0.032258064
    %v340 = vmul.f32 %v336, 0.032258064
    %v341 = vmax.f32 %v339, 1e-06
    %v342 = vmax.f32 %v340, 1e-06
    %v343 = vmin.f32 %v341, 1000000.0
    %v344 = vmin.f32 %v342, 1000000.0
    %v345 = vlog2.pop %v343
    %v346 = vmul.f32 %v345, 0.6931472
    %v347 = vlog2.pop %v344
    %v348 = vmul.f32 %v347, 0.6931472
    %vm349 = vcmask 31744
    %350 = vst.msk [vmem:[%s3] sm:$0xff] %vm349, %v346
    %351 = vst.msk [vmem:[%s3 + $0x8] sm:$0xff] %vm349, %v348
    // Predicated region
    $region18: #{tpu_custom_call.1} parent=1 // pred_check
      _
    $region19: #{tpu_custom_call.1} parent=1 // pred_check_branch
      %353 = sbr.rel (0) target = $region21
    $region20: #{tpu_custom_call.1} parent=1 // pred_region
      _
    $region21: #{tpu_custom_call.1} parent=1 // pred_fallthru
      _
    // Predicated region
    $region22: #{tpu_custom_call.1} parent=1 // pred_check
      _
    $region23: #{tpu_custom_call.1} parent=1 // pred_check_branch
      %355 = sbr.rel (0) target = $region25
    $region24: #{tpu_custom_call.1} parent=1 // pred_region
      _
    $region25: #{tpu_custom_call.1} parent=1 // pred_fallthru
      _
    %356 = vsyncpa [#allocation3], 1

</llo_original>
